<compile_context>
chip_gen: v7x
topology: tpu7x:2x2x1
jax: 0.10.0
libtpu: 0.0.40
codegen_flags: <defaults>
</compile_context>

<pallas_src>
import functools

import jax
import jax.numpy as jnp
import numpy as np
from jax import lax
from jax.experimental import pallas as pl
from jax.experimental.pallas import tpu as pltpu


def _causal_concat(x, row, *, dilation, ksize):
    """[T, C] -> [T, K*C]: K causally shifted (zero-filled) copies, lane-concat."""
    taps = []
    for k in range(ksize):
        shift = (ksize - 1 - k) * dilation
        if shift == 0:
            taps.append(x)
        else:
            xs = pltpu.roll(x, shift=shift, axis=0)          # sublane rotate (XLU)
            taps.append(jnp.where(row >= shift, xs, 0.0))    # zero wrapped rows
    return jnp.concatenate(taps, axis=-1)


def _causal_dilated_conv(x, row, w_ref, b_ref, *, dilation, ksize):
    # Conv1d(padding=(K-1)*d, dilation=d) + Chomp1d((K-1)*d):
    #   y[t] = sum_k x[t - (K-1-k)*d] @ W[k] + bias
    # expressed as a single bf16 [T, K*C] @ [K*C, Cout] MXU matmul, f32 accum.
    xcat = _causal_concat(x, row, dilation=dilation, ksize=ksize).astype(jnp.bfloat16)
    return jnp.dot(xcat, w_ref[...], preferred_element_type=jnp.float32) + b_ref[...]


def temporal_block_kernel(x_ref, w1_ref, b1_ref, w2_ref, b2_ref, *rest,
                          dilation, ksize, has_downsample):
    if has_downsample:
        wd_ref, bd_ref, o_ref = rest
    else:
        (o_ref,) = rest

    x = x_ref[0]                                              # [T, Cin] f32
    row = lax.broadcasted_iota(jnp.int32, (x.shape[0], 1), 0)  # hoisted causal index

    h = jnp.maximum(_causal_dilated_conv(x, row, w1_ref, b1_ref,
                                         dilation=dilation, ksize=ksize), 0.0)
    # TODO(synk): nn.Dropout layers are eval-mode identities in this deterministic kernel.
    h = jnp.maximum(_causal_dilated_conv(h, row, w2_ref, b2_ref,
                                         dilation=dilation, ksize=ksize), 0.0)

    if has_downsample:                                        # 1x1 Conv1d residual path
        res = jnp.dot(x.astype(jnp.bfloat16), wd_ref[...],
                      preferred_element_type=jnp.float32) + bd_ref[...]
    else:                                                     # n_inputs == n_outputs
        res = x
    o_ref[0] = jnp.maximum(h + res, 0.0)


# ----------------------------- wrapper -----------------------------

def temporal_block(x, params):
    B, T, Cin = x.shape
    K, _, Cout = params["w1"].shape                           # w: [K, Cin, Cout]
    dilation = int(params["dilation"])
    has_ds = "wd" in params

    w1 = params["w1"].reshape(K * Cin, Cout).astype(jnp.bfloat16)
    w2 = params["w2"].reshape(K * Cout, Cout).astype(jnp.bfloat16)
    b1 = params["b1"].reshape(1, Cout)
    b2 = params["b2"].reshape(1, Cout)

    def full(shape):                                          # whole-array resident tile
        return pl.BlockSpec(shape, lambda b, _s=shape: (0,) * len(_s))

    in_specs = [
        pl.BlockSpec((1, T, Cin), lambda b: (b, 0, 0)),
        full((K * Cin, Cout)), full((1, Cout)),
        full((K * Cout, Cout)), full((1, Cout)),
    ]
    args = [x, w1, b1, w2, b2]
    if has_ds:
        in_specs += [full((Cin, Cout)), full((1, Cout))]
        args += [params["wd"].astype(jnp.bfloat16), params["bd"].reshape(1, Cout)]

    kern = functools.partial(temporal_block_kernel, dilation=dilation,
                             ksize=K, has_downsample=has_ds)
    return pl.pallas_call(
        kern,
        out_shape=jax.ShapeDtypeStruct((B, T, Cout), jnp.float32),
        grid=(B,),
        in_specs=in_specs,
        out_specs=pl.BlockSpec((1, T, Cout), lambda b: (b, 0, 0)),
        compiler_params=pltpu.CompilerParams(dimension_semantics=("parallel",)),
    )(*args)


# ----------------------------- parameter init -----------------------------

def init_params(key, n_inputs, n_outputs, kernel_size, dilation):
    keys = iter(jax.random.split(key, 8))

    def wn_conv(cin, cout):
        # weight_norm(Conv1d): w_eff = g * v / ||v||  (norm over (Cin, K) per out-channel)
        v = 0.01 * jax.random.normal(next(keys), (cout, cin, kernel_size), jnp.float32)
        g = 1.0 + 0.1 * jax.random.normal(next(keys), (cout,), jnp.float32)
        norm = jnp.sqrt(jnp.sum(v * v, axis=(1, 2), keepdims=True))
        w = g[:, None, None] * v / norm                       # [Cout, Cin, K]
        b = 0.01 * jax.random.normal(next(keys), (cout,), jnp.float32)
        return jnp.transpose(w, (2, 1, 0)), b                 # -> [K, Cin, Cout]

    w1, b1 = wn_conv(n_inputs, n_outputs)
    w2, b2 = wn_conv(n_outputs, n_outputs)
    p = dict(w1=w1, b1=b1, w2=w2, b2=b2, dilation=dilation)
    if n_inputs != n_outputs:
        # nn.Conv1d(n_inputs, n_outputs, 1) downsample == pointwise linear over channels.
        p["wd"] = 0.01 * jax.random.normal(next(keys), (n_inputs, n_outputs), jnp.float32)
        p["bd"] = 0.01 * jax.random.normal(next(keys), (n_outputs,), jnp.float32)
    return p


# ----------------------------- pure-JAX reference -----------------------------
# Mirrors the kernel's precision contract (bf16 dot inputs, f32 accumulation) so
# the comparison isolates implementation correctness.

def ref_temporal_block(x, params):
    q16 = lambda a: a.astype(jnp.bfloat16).astype(jnp.float32)
    d = int(params["dilation"])

    def conv(a, w, b):
        K, T = w.shape[0], a.shape[1]
        a16, w16 = q16(a), q16(w)
        acc = jnp.zeros(a.shape[:2] + (w.shape[2],), jnp.float32)
        for k in range(K):
            s = (K - 1 - k) * d
            xs = jnp.pad(a16, ((0, 0), (s, 0), (0, 0)))[:, :T]
            acc = acc + jnp.einsum("btc,cd->btd", xs, w16[k])
        return acc + b

    h = jnp.maximum(conv(x, params["w1"], params["b1"]), 0.0)
    h = jnp.maximum(conv(h, params["w2"], params["b2"]), 0.0)
    if "wd" in params:
        res = q16(x) @ q16(params["wd"]) + params["bd"]
    else:
        res = x
    return jnp.maximum(h + res, 0.0)


# ----------------------------- main -----------------------------

if __name__ == "__main__":
    # batch=2, seq=16, channels=32, kernel=3, dilation=2  (n_inputs == n_outputs,
    # matching the HDT usage where TemporalBlock keeps the channel count and the
    # downsample branch is None; padding=(K-1)*d=4 is chomped inside the kernel).
    B, T, C, K, DIL = 2, 16, 32, 3, 2
    key = jax.random.PRNGKey(0)
    kx, kp = jax.random.split(key)
    x = jax.random.normal(kx, (B, T, C), jnp.float32)
    params = init_params(kp, n_inputs=C, n_outputs=C, kernel_size=K, dilation=DIL)

    out = jax.block_until_ready(temporal_block(x, params))
    ref = ref_temporal_block(x, params)

    assert out.shape == (B, T, C) and out.dtype == jnp.float32
    np.testing.assert_allclose(np.asarray(out), np.asarray(ref), rtol=2e-2, atol=2e-2)
    print("KERNEL_OK")
</pallas_src>

<mosaic_0001>
module attributes {stable_mosaic.version = 11 : i64} {
  func.func @temporal_block_kernel(%arg0: i32, %arg1: memref<1x16x32xf32, #tpu.memory_space<vmem>>, %arg2: memref<96x32xbf16, #tpu.memory_space<vmem>>, %arg3: memref<1x32xf32, #tpu.memory_space<vmem>>, %arg4: memref<96x32xbf16, #tpu.memory_space<vmem>>, %arg5: memref<1x32xf32, #tpu.memory_space<vmem>>, %arg6: memref<1x16x32xf32, #tpu.memory_space<vmem>>) attributes {dimension_semantics = [#tpu.dimension_semantics<parallel>], iteration_bounds = array<i64: 2>, scalar_prefetch = 0 : i64, scratch_operands = 0 : i64, tpu.core_type = #tpu.core_type<tc>, window_params = [{transform_indices = @transform_0, window_bounds = array<i64: 1, 16, 32>}, {pipeline_mode = #tpu.pipeline_mode<synchronous>, transform_indices = @transform_1, window_bounds = array<i64: 96, 32>}, {pipeline_mode = #tpu.pipeline_mode<synchronous>, transform_indices = @transform_2, window_bounds = array<i64: 1, 32>}, {pipeline_mode = #tpu.pipeline_mode<synchronous>, transform_indices = @transform_3, window_bounds = array<i64: 96, 32>}, {pipeline_mode = #tpu.pipeline_mode<synchronous>, transform_indices = @transform_4, window_bounds = array<i64: 1, 32>}, {transform_indices = @transform_5, window_bounds = array<i64: 1, 16, 32>}]} {
    %c0 = arith.constant 0 : index
    %c0_0 = arith.constant 0 : index
    %c0_1 = arith.constant 0 : index
    %0 = vector.load %arg1[%c0, %c0_0, %c0_1] : memref<1x16x32xf32, #tpu.memory_space<vmem>>, vector<1x16x32xf32>
    %1 = vector.shape_cast %0 : vector<1x16x32xf32> to vector<16x32xf32>
    %2 = tpu.iota {dimensions = array<i32: 0>} : vector<16x1xi32>
    %c4_i32 = arith.constant 4 : i32
    %3 = tpu.dynamic_rotate %1 by %c4_i32 dim 0 : vector<16x32xf32>, i32 -> vector<16x32xf32>
    %c4_i32_2 = arith.constant 4 : i32
    %4 = vector.broadcast %c4_i32_2 : i32 to vector<16x1xi32>
    %5 = arith.cmpi sge, %2, %4 : vector<16x1xi32>
    %cst = arith.constant 0.000000e+00 : f32
    %6 = vector.shape_cast %5 : vector<16x1xi1> to vector<16x1xi1>
    %7 = vector.broadcast %6 : vector<16x1xi1> to vector<16x32xi1>
    %8 = vector.broadcast %cst : f32 to vector<16x32xf32>
    %9 = arith.select %7, %3, %8 : vector<16x32xi1>, vector<16x32xf32>
    %c2_i32 = arith.constant 2 : i32
    %10 = tpu.dynamic_rotate %1 by %c2_i32 dim 0 : vector<16x32xf32>, i32 -> vector<16x32xf32>
    %c2_i32_3 = arith.constant 2 : i32
    %11 = vector.broadcast %c2_i32_3 : i32 to vector<16x1xi32>
    %12 = arith.cmpi sge, %2, %11 : vector<16x1xi32>
    %cst_4 = arith.constant 0.000000e+00 : f32
    %13 = vector.shape_cast %12 : vector<16x1xi1> to vector<16x1xi1>
    %14 = vector.broadcast %13 : vector<16x1xi1> to vector<16x32xi1>
    %15 = vector.broadcast %cst_4 : f32 to vector<16x32xf32>
    %16 = arith.select %14, %10, %15 : vector<16x32xi1>, vector<16x32xf32>
    %17 = tpu.concatenate %9, %16, %1 in 1 : vector<16x32xf32>, vector<16x32xf32>, vector<16x32xf32> -> vector<16x96xf32>
    %18 = arith.truncf %17 : vector<16x96xf32> to vector<16x96xbf16>
    %c0_5 = arith.constant 0 : index
    %c0_6 = arith.constant 0 : index
    %19 = vector.load %arg2[%c0_5, %c0_6] : memref<96x32xbf16, #tpu.memory_space<vmem>>, vector<96x32xbf16>
    %cst_7 = arith.constant dense<0.000000e+00> : vector<16x32xf32>
    %20 = tpu.matmul %18, %19, %cst_7 {dimension_numbers = #tpu.dot_dimension_numbers<[1], [0], [0], [1], [0, 0, 1, 1], [], []>} : vector<16x96xbf16>, vector<96x32xbf16>, vector<16x32xf32> -> vector<16x32xf32>
    %c0_8 = arith.constant 0 : index
    %c0_9 = arith.constant 0 : index
    %21 = vector.load %arg3[%c0_8, %c0_9] : memref<1x32xf32, #tpu.memory_space<vmem>>, vector<1x32xf32>
    %22 = vector.broadcast %21 : vector<1x32xf32> to vector<16x32xf32>
    %23 = arith.addf %20, %22 : vector<16x32xf32>
    %cst_10 = arith.constant 0.000000e+00 : f32
    %24 = vector.broadcast %cst_10 : f32 to vector<16x32xf32>
    %25 = arith.maximumf %23, %24 : vector<16x32xf32>
    %c4_i32_11 = arith.constant 4 : i32
    %26 = tpu.dynamic_rotate %25 by %c4_i32_11 dim 0 : vector<16x32xf32>, i32 -> vector<16x32xf32>
    %c4_i32_12 = arith.constant 4 : i32
    %27 = vector.broadcast %c4_i32_12 : i32 to vector<16x1xi32>
    %28 = arith.cmpi sge, %2, %27 : vector<16x1xi32>
    %cst_13 = arith.constant 0.000000e+00 : f32
    %29 = vector.shape_cast %28 : vector<16x1xi1> to vector<16x1xi1>
    %30 = vector.broadcast %29 : vector<16x1xi1> to vector<16x32xi1>
    %31 = vector.broadcast %cst_13 : f32 to vector<16x32xf32>
    %32 = arith.select %30, %26, %31 : vector<16x32xi1>, vector<16x32xf32>
    %c2_i32_14 = arith.constant 2 : i32
    %33 = tpu.dynamic_rotate %25 by %c2_i32_14 dim 0 : vector<16x32xf32>, i32 -> vector<16x32xf32>
    %c2_i32_15 = arith.constant 2 : i32
    %34 = vector.broadcast %c2_i32_15 : i32 to vector<16x1xi32>
    %35 = arith.cmpi sge, %2, %34 : vector<16x1xi32>
    %cst_16 = arith.constant 0.000000e+00 : f32
    %36 = vector.shape_cast %35 : vector<16x1xi1> to vector<16x1xi1>
    %37 = vector.broadcast %36 : vector<16x1xi1> to vector<16x32xi1>
    %38 = vector.broadcast %cst_16 : f32 to vector<16x32xf32>
    %39 = arith.select %37, %33, %38 : vector<16x32xi1>, vector<16x32xf32>
    %40 = tpu.concatenate %32, %39, %25 in 1 : vector<16x32xf32>, vector<16x32xf32>, vector<16x32xf32> -> vector<16x96xf32>
    %41 = arith.truncf %40 : vector<16x96xf32> to vector<16x96xbf16>
    %c0_17 = arith.constant 0 : index
    %c0_18 = arith.constant 0 : index
    %42 = vector.load %arg4[%c0_17, %c0_18] : memref<96x32xbf16, #tpu.memory_space<vmem>>, vector<96x32xbf16>
    %cst_19 = arith.constant dense<0.000000e+00> : vector<16x32xf32>
    %43 = tpu.matmul %41, %42, %cst_19 {dimension_numbers = #tpu.dot_dimension_numbers<[1], [0], [0], [1], [0, 0, 1, 1], [], []>} : vector<16x96xbf16>, vector<96x32xbf16>, vector<16x32xf32> -> vector<16x32xf32>
    %c0_20 = arith.constant 0 : index
    %c0_21 = arith.constant 0 : index
    %44 = vector.load %arg5[%c0_20, %c0_21] : memref<1x32xf32, #tpu.memory_space<vmem>>, vector<1x32xf32>
    %45 = vector.broadcast %44 : vector<1x32xf32> to vector<16x32xf32>
    %46 = arith.addf %43, %45 : vector<16x32xf32>
    %cst_22 = arith.constant 0.000000e+00 : f32
    %47 = vector.broadcast %cst_22 : f32 to vector<16x32xf32>
    %48 = arith.maximumf %46, %47 : vector<16x32xf32>
    %49 = arith.addf %48, %1 : vector<16x32xf32>
    %cst_23 = arith.constant 0.000000e+00 : f32
    %50 = vector.broadcast %cst_23 : f32 to vector<16x32xf32>
    %51 = arith.maximumf %49, %50 : vector<16x32xf32>
    %c0_24 = arith.constant 0 : index
    %c0_25 = arith.constant 0 : index
    %c0_26 = arith.constant 0 : index
    %52 = vector.load %arg6[%c0_24, %c0_25, %c0_26] : memref<1x16x32xf32, #tpu.memory_space<vmem>>, vector<1x16x32xf32>
    %53 = vector.shape_cast %52 : vector<1x16x32xf32> to vector<16x32xf32>
    %54 = vector.shape_cast %51 : vector<16x32xf32> to vector<1x16x32xf32>
    tpu.vector_store %arg6[%c0_24, %c0_25, %c0_26], %54 {strides = array<i32>} : memref<1x16x32xf32, #tpu.memory_space<vmem>>, vector<1x16x32xf32>,
    return
  }
  func.func @transform_0(%arg0: i32) -> (i32, i32, i32) {
    %c0_i32 = arith.constant 0 : i32
    %c0_i32_0 = arith.constant 0 : i32
    %c0_i32_1 = arith.constant 0 : i32
    return %arg0, %c0_i32, %c0_i32_0 : i32, i32, i32
  }
  func.func @transform_1(%arg0: i32) -> (i32, i32) {
    %c0_i32 = arith.constant 0 : i32
    %c0_i32_0 = arith.constant 0 : i32
    %c0_i32_1 = arith.constant 0 : i32
    return %c0_i32, %c0_i32_0 : i32, i32
  }
  func.func @transform_2(%arg0: i32) -> (i32, i32) {
    %c0_i32 = arith.constant 0 : i32
    %c0_i32_0 = arith.constant 0 : i32
    %c0_i32_1 = arith.constant 0 : i32
    return %c0_i32, %c0_i32_0 : i32, i32
  }
  func.func @transform_3(%arg0: i32) -> (i32, i32) {
    %c0_i32 = arith.constant 0 : i32
    %c0_i32_0 = arith.constant 0 : i32
    %c0_i32_1 = arith.constant 0 : i32
    return %c0_i32, %c0_i32_0 : i32, i32
  }
  func.func @transform_4(%arg0: i32) -> (i32, i32) {
    %c0_i32 = arith.constant 0 : i32
    %c0_i32_0 = arith.constant 0 : i32
    %c0_i32_1 = arith.constant 0 : i32
    return %c0_i32, %c0_i32_0 : i32, i32
  }
  func.func @transform_5(%arg0: i32) -> (i32, i32, i32) {
    %c0_i32 = arith.constant 0 : i32
    %c0_i32_0 = arith.constant 0 : i32
    %c0_i32_1 = arith.constant 0 : i32
    return %arg0, %c0_i32, %c0_i32_0 : i32, i32, i32
  }
}

</mosaic_0001>

<llo_original>
// kernel: tpu_custom_call.1
$region0: #{tpu_custom_call.1}
  #allocation0 [shape = 'u32[]', space=smem, size = 0x4, offset = 0x4, fixed_abs, tag = 'smem constant byte address 0x4 - core index']
  #allocation1 [shape = 'u32[144,128]{1,0:T(1,128)}', space=vmem, size = 0x12000, scoped, tag = 'internal scratch']
  %s0 = inlined_call_operand.vmem [shape: f32[2,16,32], index: 0, kind: input, shape index: {}]
  %s1 = inlined_call_operand.vmem [shape: bf16[96,32], index: 1, kind: input, shape index: {}]
  %s2 = inlined_call_operand.vmem [shape: f32[1,32], index: 2, kind: input, shape index: {}]
  %s3 = inlined_call_operand.vmem [shape: bf16[96,32], index: 3, kind: input, shape index: {}]
  %s4 = inlined_call_operand.vmem [shape: f32[1,32], index: 4, kind: input, shape index: {}]
  %s5 = inlined_call_operand.hbm [shape: f32[2,16,32], index: 5, kind: output, shape index: {}]
  %s6 = sld [smem:[#allocation0]]
  $region53: #{tpu_custom_call.1} parent=0
    _
  %s8 = ssub.s32 1, %s6
  %s9 = scalar_select 0, %s8, %s6
  $region1: #{tpu_custom_call.1} parent=0
    #allocation2 [shape = 'u8[16384]{0}', space=vmem, size = 0x4000, scoped, tag = 'output window, operand 0']
    #allocation3 [shape = 's32[2]{0}', space=sflag, size = 0x8, scoped, tag = 'scoped memory for tpu_custom_call.1']
    %10 = vsyncpa [#allocation3], 0
    %s11 = scalar_lea.sflag [#allocation3], 1
    %12 = vsyncpa %s11, 0
    loop: start=0, step=1, limit=4
    $region2: #{tpu_custom_call.1} parent=1 // loop_pre_header
      _
    $region3: #{tpu_custom_call.1} parent=1 // loop_header
      %s14 = sphi 0, %s18
      %p15 = scmp.ge.s32.totalorder %s14, 4
      %s24 = sphi 0, %s26
      %s27 = sphi 0, %s24
      %s28 = sphi 0, %s27
      %s44 = sphi 0, %s28
      %s48 = sphi 0, %s48
      %s50 = sphi 0, %s48
      %s51 = sphi 0, %s50
      %s65 = sphi 0, %s51
      %s69 = sphi 0, %s69
      %s71 = sphi 0, %s69
      %s72 = sphi 0, %s71
      %s86 = sphi 0, %s72
      %s90 = sphi 0, %s90
      %s92 = sphi 0, %s90
      %s93 = sphi 0, %s92
      %s107 = sphi 0, %s93
      %s111 = sphi 0, %s111
      %s113 = sphi 0, %s111
      %s114 = sphi 0, %s113
      %s128 = sphi 0, %s114
      %s134 = sphi 0, %s136
      %s137 = sphi 0, %s134
      %s138 = sphi 0, %s137
      %s154 = sphi 0, %s138
    $region4: #{tpu_custom_call.1} parent=1 // loop_header_branch
      %17 = sbr.rel (%p15) target = $region8
    $region5: #{tpu_custom_call.1} parent=1 // loop_body
      %s19 = ssub.s32 %s14, 1
      %s20 = ssub.s32 %s14, 2
      %s21 = sadd.s32 %s14, 1
      %s22 = ssub.s32 %s14, %s21
      %p23 = scmp.eq.s32.totalorder %s22, 0
      %s25 = sadd.s32 %s24, 1
      %s26 = scalar_select %p23, %s24, %s25
      %p29 = pneg %p23
      %p30 = scmp.eq.s32.totalorder %s14, 1
      %p31 = por %p29, %p30
      %p32 = scmp.ne.s32.totalorder %s24, %s27
      %p33 = scmp.eq.s32.totalorder %s14, 0
      %p34 = por %p32, %p33
      %p35 = scmp.ne.s32.totalorder %s24, %s27
      %p36 = scmp.eq.s32.totalorder %s19, 1
      %p37 = por %p35, %p36
      %p38 = scmp.ne.s32.totalorder %s27, %s28
      %p39 = scmp.eq.s32.totalorder %s19, 0
      %p40 = por %p38, %p39
      %p41 = scmp.ne.s32.totalorder %s27, %s28
      %p42 = scmp.eq.s32.totalorder %s20, 1
      %p43 = por %p41, %p42
      %p45 = scmp.ne.s32.totalorder %s28, %s44
      %p46 = scmp.eq.s32.totalorder %s20, 0
      %p47 = por %p45, %p46
      %s49 = sadd.s32 %s48, 1
      %p52 = scmp.eq.s32.totalorder %s14, 1
      %p53 = scmp.ne.s32.totalorder %s48, %s50
      %p54 = scmp.eq.s32.totalorder %s14, 0
      %p55 = por %p53, %p54
      %p56 = scmp.ne.s32.totalorder %s48, %s50
      %p57 = scmp.eq.s32.totalorder %s19, 1
      %p58 = por %p56, %p57
      %p59 = scmp.ne.s32.totalorder %s50, %s51
      %p60 = scmp.eq.s32.totalorder %s19, 0
      %p61 = por %p59, %p60
      %p62 = scmp.ne.s32.totalorder %s50, %s51
      %p63 = scmp.eq.s32.totalorder %s20, 1
      %p64 = por %p62, %p63
      %p66 = scmp.ne.s32.totalorder %s51, %s65
      %p67 = scmp.eq.s32.totalorder %s20, 0
      %p68 = por %p66, %p67
      %s70 = sadd.s32 %s69, 1
      %p73 = scmp.eq.s32.totalorder %s14, 1
      %p74 = scmp.ne.s32.totalorder %s69, %s71
      %p75 = scmp.eq.s32.totalorder %s14, 0
      %p76 = por %p74, %p75
      %p77 = scmp.ne.s32.totalorder %s69, %s71
      %p78 = scmp.eq.s32.totalorder %s19, 1
      %p79 = por %p77, %p78
      %p80 = scmp.ne.s32.totalorder %s71, %s72
      %p81 = scmp.eq.s32.totalorder %s19, 0
      %p82 = por %p80, %p81
      %p83 = scmp.ne.s32.totalorder %s71, %s72
      %p84 = scmp.eq.s32.totalorder %s20, 1
      %p85 = por %p83, %p84
      %p87 = scmp.ne.s32.totalorder %s72, %s86
      %p88 = scmp.eq.s32.totalorder %s20, 0
      %p89 = por %p87, %p88
      %s91 = sadd.s32 %s90, 1
      %p94 = scmp.eq.s32.totalorder %s14, 1
      %p95 = scmp.ne.s32.totalorder %s90, %s92
      %p96 = scmp.eq.s32.totalorder %s14, 0
      %p97 = por %p95, %p96
      %p98 = scmp.ne.s32.totalorder %s90, %s92
      %p99 = scmp.eq.s32.totalorder %s19, 1
      %p100 = por %p98, %p99
      %p101 = scmp.ne.s32.totalorder %s92, %s93
      %p102 = scmp.eq.s32.totalorder %s19, 0
      %p103 = por %p101, %p102
      %p104 = scmp.ne.s32.totalorder %s92, %s93
      %p105 = scmp.eq.s32.totalorder %s20, 1
      %p106 = por %p104, %p105
      %p108 = scmp.ne.s32.totalorder %s93, %s107
      %p109 = scmp.eq.s32.totalorder %s20, 0
      %p110 = por %p108, %p109
      %s112 = sadd.s32 %s111, 1
      %p115 = scmp.eq.s32.totalorder %s14, 1
      %p116 = scmp.ne.s32.totalorder %s111, %s113
      %p117 = scmp.eq.s32.totalorder %s14, 0
      %p118 = por %p116, %p117
      %p119 = scmp.ne.s32.totalorder %s111, %s113
      %p120 = scmp.eq.s32.totalorder %s19, 1
      %p121 = por %p119, %p120
      %p122 = scmp.ne.s32.totalorder %s113, %s114
      %p123 = scmp.eq.s32.totalorder %s19, 0
      %p124 = por %p122, %p123
      %p125 = scmp.ne.s32.totalorder %s113, %s114
      %p126 = scmp.eq.s32.totalorder %s20, 1
      %p127 = por %p125, %p126
      %p129 = scmp.ne.s32.totalorder %s114, %s128
      %p130 = scmp.eq.s32.totalorder %s20, 0
      %p131 = por %p129, %p130
      %s132 = ssub.s32 %s14, %s21
      %p133 = scmp.eq.s32.totalorder %s132, 0
      %s135 = sadd.s32 %s134, 1
      %s136 = scalar_select %p133, %s134, %s135
      %p139 = pneg %p133
      %p140 = scmp.eq.s32.totalorder %s14, 1
      %p141 = por %p139, %p140
      %p142 = scmp.ne.s32.totalorder %s134, %s137
      %p143 = scmp.eq.s32.totalorder %s14, 0
      %p144 = por %p142, %p143
      %p145 = scmp.ne.s32.totalorder %s134, %s137
      %p146 = scmp.eq.s32.totalorder %s19, 1
      %p147 = por %p145, %p146
      %p148 = scmp.ne.s32.totalorder %s137, %s138
      %p149 = scmp.eq.s32.totalorder %s19, 0
      %p150 = por %p148, %p149
      %p151 = scmp.ne.s32.totalorder %s137, %s138
      %p152 = scmp.eq.s32.totalorder %s20, 1
      %p153 = por %p151, %p152
      %p155 = scmp.ne.s32.totalorder %s138, %s154
      %p156 = scmp.eq.s32.totalorder %s20, 0
      %p157 = por %p155, %p156
      %p158 = scmp.le.s32.totalorder 1, %s14
      %p159 = scmp.lt.s32.totalorder %s14, 3
      %p160 = pnand %p158, %p159
      %p161 = pneg %p160
      // Predicated region
      $region9: #{tpu_custom_call.1} parent=5 // pred_check
        _
      $region10: #{tpu_custom_call.1} parent=5 // pred_check_branch
        %163 = sbr.rel (%p160) target = $region12
      $region11: #{tpu_custom_call.1} parent=5 // pred_region
        %s164 = ssub.s32 %s14, 1
        // Predicated region
        $region13: #{tpu_custom_call.1} parent=11 // pred_check
          %p165 = pneg %p61
        $region14: #{tpu_custom_call.1} parent=11 // pred_check_branch
          %167 = sbr.rel (%p165) target = $region16
        $region15: #{tpu_custom_call.1} parent=11 // pred_region
          _
        $region16: #{tpu_custom_call.1} parent=11 // pred_fallthru
          _
        // Predicated region
        $region17: #{tpu_custom_call.1} parent=11 // pred_check
          %p168 = pneg %p82
        $region18: #{tpu_custom_call.1} parent=11 // pred_check_branch
          %170 = sbr.rel (%p168) target = $region20
        $region19: #{tpu_custom_call.1} parent=11 // pred_region
          _
        $region20: #{tpu_custom_call.1} parent=11 // pred_fallthru
          _
        // Predicated region
        $region21: #{tpu_custom_call.1} parent=11 // pred_check
          %p171 = pneg %p103
        $region22: #{tpu_custom_call.1} parent=11 // pred_check_branch
          %173 = sbr.rel (%p171) target = $region24
        $region23: #{tpu_custom_call.1} parent=11 // pred_region
          _
        $region24: #{tpu_custom_call.1} parent=11 // pred_fallthru
          _
        // Predicated region
        $region25: #{tpu_custom_call.1} parent=11 // pred_check
          %p174 = pneg %p124
        $region26: #{tpu_custom_call.1} parent=11 // pred_check_branch
          %176 = sbr.rel (%p174) target = $region28
        $region27: #{tpu_custom_call.1} parent=11 // pred_region
          _
        $region28: #{tpu_custom_call.1} parent=11 // pred_fallthru
          _
      $region12: #{tpu_custom_call.1} parent=5 // pred_fallthru
        _
      %p177 = scmp.lt.s32.totalorder %s14, 2
      // Predicated region
      $region29: #{tpu_custom_call.1} parent=5 // pred_check
        %p178 = pneg %p177
      $region30: #{tpu_custom_call.1} parent=5 // pred_check_branch
        %180 = sbr.rel (%p178) target = $region32
      $region31: #{tpu_custom_call.1} parent=5 // pred_region
        // Predicated region
        $region33: #{tpu_custom_call.1} parent=31 // pred_check
          %p181 = pneg %p34
        $region34: #{tpu_custom_call.1} parent=31 // pred_check_branch
          %183 = sbr.rel (%p181) target = $region36
        $region35: #{tpu_custom_call.1} parent=31 // pred_region
          %p184 = scmp.lt.s32.totalorder %s14, 1
          %s185 = scalar_select %p184, %s14, 1
          %s186 = smul.addr %s185, 2
          %s187 = smul.addr %s186, 8
          %s188 = scalar_lea.vmem %s0, %s187
        $region36: #{tpu_custom_call.1} parent=31 // pred_fallthru
          _
      $region32: #{tpu_custom_call.1} parent=5 // pred_fallthru
        _
      %p189 = scmp.le.s32.totalorder 1, %s14
      %p190 = scmp.lt.s32.totalorder %s14, 3
      %p191 = pnand %p189, %p190
      %p192 = pneg %p191
      // Predicated region
      $region37: #{tpu_custom_call.1} parent=5 // pred_check
        _
      $region38: #{tpu_custom_call.1} parent=5 // pred_check_branch
        %194 = sbr.rel (%p191) target = $region40
      $region39: #{tpu_custom_call.1} parent=5 // pred_region
        %s195 = ssub.s32 %s14, 1
        %p196 = scmp.lt.s32.totalorder %s19, 1
        %s197 = scalar_select %p196, %s19, 1
        %s198 = smul.addr %s197, 2
        %s199 = smul.addr %s198, 8
        %s200 = scalar_lea.vmem %s0, %s199
        %p201 = pneg %p40
        %p202 = pneg %p37
        %p203 = pneg %p61
        %p204 = pneg %p58
        %p205 = pneg %p82
        %p206 = pneg %p79
        %p207 = pneg %p103
        %p208 = pneg %p100
        %p209 = pneg %p124
        %p210 = pneg %p121
        %p211 = pneg %p150
        %p212 = pneg %p147
        %s213 = sand.u32 %s137, 1
        %s214 = scalar_lea.sflag [#allocation3], %s213
        %s215 = sand.u32 %s137, 1
        %s216 = smul.addr %s215, 16
        %s217 = scalar_lea.vmem [#allocation2], %s216
        %p218 = scmp.lt.s32.totalorder %s19, 1
        %s219 = scalar_select %p218, %s19, 1
        %s220 = smul.addr %s219, 2
        %s221 = smul.addr %s220, 8
        %s222 = scalar_lea.vmem %s0, %s221
        %v224 = vld [vmem:[%s222] sm:$0xff]
        %v225 = vld [vmem:[%s222 + $0x8] sm:$0xff]
        %v226 = vlaneseq
        %v227 = vshrl.u32 %v226, 7
        %v228 = vadd.s32 %v227, 8
        %v229 = vrot.slane %v224, 4
        %v230 = vrot.slane %v225, 4
        %vm231 = vcmp.lt.s32.totalorder %v227, 4
        %v232 = vsel %vm231, %v229, %v230
        %v233 = vsel %vm231, %v230, %v229
        %vm234 = vcmp.ge.s32.totalorder %v227, 4
        %vm235 = vcmp.ge.s32.totalorder %v228, 4
        %v236 = vsel %vm234, 1, 0
        %v237 = vsel %vm235, 1, 0
        %vm238 = vcmp.eq.s32.totalorder %v236, 1
        %vm239 = vcmp.eq.s32.totalorder %v237, 1
        %v240 = vsel %vm238, %v233, 0.0
        %v241 = vsel %vm239, %v232, 0.0
        %v242 = vrot.slane %v224, 6
        %v243 = vrot.slane %v225, 6
        %vm244 = vcmp.lt.s32.totalorder %v227, 2
        %v245 = vsel %vm244, %v242, %v243
        %v246 = vsel %vm244, %v243, %v242
        %vm247 = vcmp.ge.s32.totalorder %v227, 2
        %vm248 = vcmp.ge.s32.totalorder %v228, 2
        %v249 = vsel %vm247, 1, 0
        %v250 = vsel %vm248, 1, 0
        %vm251 = vcmp.eq.s32.totalorder %v249, 1
        %vm252 = vcmp.eq.s32.totalorder %v250, 1
        %v253 = vsel %vm251, %v246, 0.0
        %v254 = vsel %vm252, %v245, 0.0
        %257 = vrot.lane.b32.xlu0 %v253, 32
        %v258 = vpop.permute.xlu0 %257
        %259 = vrot.lane.b32.xlu0 %v254, 32
        %v260 = vpop.permute.xlu0 %259
        %265 = vrot.lane.b32.xlu0 %v224, 64
        %v266 = vpop.permute.xlu0 %265
        %267 = vrot.lane.b32.xlu0 %v225, 64
        %v268 = vpop.permute.xlu0 %267
        %vm271 = vcmask 261120
        %v272 = vsel %vm271, %v240, %v258
        %v273 = vsel %vm271, %v241, %v260
        %vm274 = vcmask 523264
        %v275 = vsel %vm274, %v272, %v266
        %v276 = vsel %vm274, %v273, %v268
        %v277 = vpack.c.bf16 %v276, %v275
        %v278 = vld [vmem:[%s1] sm:$0xf]
        %v279 = vld [vmem:[%s1 + $0x4] sm:$0xf]
        %v280 = vld [vmem:[%s1 + $0x8] sm:$0xf]
        %v281 = vld [vmem:[%s1 + $0xc] sm:$0xf]
        %v282 = vld [vmem:[%s1 + $0x10] sm:$0xf]
        %v283 = vld [vmem:[%s1 + $0x14] sm:$0xf]
        %v284 = vld [vmem:[%s1 + $0x18] sm:$0xf]
        %v285 = vld [vmem:[%s1 + $0x1c] sm:$0xf]
        %v286 = vld [vmem:[%s1 + $0x20] sm:$0xf]
        %v287 = vld [vmem:[%s1 + $0x24] sm:$0xf]
        %v288 = vld [vmem:[%s1 + $0x28] sm:$0xf]
        %v289 = vld [vmem:[%s1 + $0x2c] sm:$0xf]
        %v290 = vld [vmem:[%s2] sm:$0x1]
        %v292 = vlaneseq
        %v293 = vshrl.u32 %v292, 7
        %v294 = vsub.s32 0, %v293
        %v295 = vrot.slane %v290, %v294
        %v309 = vunpack.c.l.b16 %v278
        %v310 = vunpack.c.l.b16 %v279
        %v311 = vunpack.c.l.b16 %v280
        %v312 = vunpack.c.l.b16 %v281
        %v313 = vunpack.c.l.b16 %v282
        %v314 = vunpack.c.l.b16 %v283
        %v315 = vunpack.c.l.b16 %v284
        %v316 = vunpack.c.l.b16 %v285
        %v317 = vunpack.c.l.b16 %v286
        %v318 = vunpack.c.l.b16 %v287
        %v319 = vunpack.c.l.b16 %v288
        %v320 = vunpack.c.l.b16 %v289
        %v321 = vpack.c.b16 %v310, %v309
        %v322 = vpack.c.b16 %v312, %v311
        %v323 = vpack.c.b16 %v314, %v313
        %v324 = vpack.c.b16 %v316, %v315
        %v325 = vpack.c.b16 %v318, %v317
        %v326 = vpack.c.b16 %v320, %v319
        %vm333 = vcmask 785408
        %v335 = vsel %vm333, %v277, 0
        %337 = vmatprep.subr.bf16.mxu0 0
        %338 = vmatpush1.bf16.msra.mxu0 %v321
        %339 = vmatprep.subr.bf16.mxu0 0
        %340 = vmatpush1.bf16.msra.mxu0 %v322
        %341 = vmatprep.subr.bf16.mxu0 0
        %342 = vmatpush1.bf16.msra.mxu0 %v323
        %343 = vmatprep.subr.bf16.mxu0 0
        %344 = vmatpush1.bf16.msra.mxu0 %v324
        %345 = vmatprep.subr.bf16.mxu0 0
        %346 = vmatpush1.bf16.msra.mxu0 %v325
        %347 = vmatprep.subr.bf16.mxu0 0
        %348 = vmatpush1.bf16.msra.mxu0 %v326
        %349 = vmatprep.subr.bf16.mxu0 0
        %350 = vmatpush1.bf16.msra.mxu0 0
        %351 = vmatprep.subr.bf16.mxu0 0
        %352 = vmatpush1.bf16.msra.mxu0 0
        %353 = vmatprep.subr.bf16.mxu0 0
        %354 = vmatpush1.bf16.msra.mxu0 0
        %355 = vmatprep.subr.bf16.mxu0 0
        %356 = vmatpush1.bf16.msra.mxu0 0
        %357 = vmatprep.subr.bf16.mxu0 0
        %358 = vmatpush1.bf16.msra.mxu0 0
        %359 = vmatprep.subr.bf16.mxu0 0
        %360 = vmatpush1.bf16.msra.mxu0 0
        %361 = vmatprep.subr.bf16.mxu0 0
        %362 = vmatpush1.bf16.msra.mxu0 0
        %363 = vmatprep.subr.bf16.mxu0 0
        %364 = vmatpush1.bf16.msra.mxu0 0
        %365 = vmatprep.subr.bf16.mxu0 0
        %366 = vmatpush1.bf16.msra.mxu0 0
        %367 = vmatprep.subr.bf16.mxu0 0
        %368 = vmatpush1.bf16.msra.mxu0 0
        %369 = vmatprep.mubr.bf16.mxu0 0
        %370 = vmatmul.mubr.bf16.gmra.mrb[0].mxu0 %v335
        %v371 = vpop.f32.mrb[0].mxu0
        %v372 = vadd.f32 %v295, %v371
        %v373 = vpop.f32.mrb[0].mxu0
        %v374 = vpop.f32.mrb[0].mxu0
        %v375 = vadd.f32 %v295, %v374
        %v376 = vpop.f32.mrb[0].mxu0
        %377 = vdwg.mxu0
        %v378 = vmax.f32 %v372, 0.0
        %v379 = vmax.f32 %v375, 0.0
        %v380 = vrot.slane %v378, 4
        %v381 = vrot.slane %v379, 4
        %v382 = vsel %vm231, %v380, %v381
        %v383 = vsel %vm231, %v381, %v380
        %v384 = vsel %vm238, %v383, 0.0
        %v385 = vsel %vm239, %v382, 0.0
        %v386 = vrot.slane %v378, 6
        %v387 = vrot.slane %v379, 6
        %v388 = vsel %vm244, %v386, %v387
        %v389 = vsel %vm244, %v387, %v386
        %v390 = vsel %vm251, %v389, 0.0
        %v391 = vsel %vm252, %v388, 0.0
        %394 = vrot.lane.b32.xlu0 %v390, 32
        %v395 = vpop.permute.xlu0 %394
        %396 = vrot.lane.b32.xlu0 %v391, 32
        %v397 = vpop.permute.xlu0 %396
        %402 = vrot.lane.b32.xlu0 %v378, 64
        %v403 = vpop.permute.xlu0 %402
        %404 = vrot.lane.b32.xlu0 %v379, 64
        %v405 = vpop.permute.xlu0 %404
        %v408 = vsel %vm271, %v384, %v395
        %v409 = vsel %vm271, %v385, %v397
        %v410 = vsel %vm274, %v408, %v403
        %v411 = vsel %vm274, %v409, %v405
        %v412 = vpack.c.bf16 %v411, %v410
        %v413 = vld [vmem:[%s3] sm:$0xf]
        %v414 = vld [vmem:[%s3 + $0x4] sm:$0xf]
        %v415 = vld [vmem:[%s3 + $0x8] sm:$0xf]
        %v416 = vld [vmem:[%s3 + $0xc] sm:$0xf]
        %v417 = vld [vmem:[%s3 + $0x10] sm:$0xf]
        %v418 = vld [vmem:[%s3 + $0x14] sm:$0xf]
        %v419 = vld [vmem:[%s3 + $0x18] sm:$0xf]
        %v420 = vld [vmem:[%s3 + $0x1c] sm:$0xf]
        %v421 = vld [vmem:[%s3 + $0x20] sm:$0xf]
        %v422 = vld [vmem:[%s3 + $0x24] sm:$0xf]
        %v423 = vld [vmem:[%s3 + $0x28] sm:$0xf]
        %v424 = vld [vmem:[%s3 + $0x2c] sm:$0xf]
        %v425 = vld [vmem:[%s4] sm:$0x1]
        %v427 = vlaneseq
        %v428 = vshrl.u32 %v427, 7
        %v429 = vsub.s32 0, %v428
        %v430 = vrot.slane %v425, %v429
        %v444 = vunpack.c.l.b16 %v413
        %v445 = vunpack.c.l.b16 %v414
        %v446 = vunpack.c.l.b16 %v415
        %v447 = vunpack.c.l.b16 %v416
        %v448 = vunpack.c.l.b16 %v417
        %v449 = vunpack.c.l.b16 %v418
        %v450 = vunpack.c.l.b16 %v419
        %v451 = vunpack.c.l.b16 %v420
        %v452 = vunpack.c.l.b16 %v421
        %v453 = vunpack.c.l.b16 %v422
        %v454 = vunpack.c.l.b16 %v423
        %v455 = vunpack.c.l.b16 %v424
        %v456 = vpack.c.b16 %v445, %v444
        %v457 = vpack.c.b16 %v447, %v446
        %v458 = vpack.c.b16 %v449, %v448
        %v459 = vpack.c.b16 %v451, %v450
        %v460 = vpack.c.b16 %v453, %v452
        %v461 = vpack.c.b16 %v455, %v454
        %v469 = vsel %vm333, %v412, 0
        %471 = vmatprep.subr.bf16.mxu0 0
        %472 = vmatpush1.bf16.msra.mxu0 %v456
        %473 = vmatprep.subr.bf16.mxu0 0
        %474 = vmatpush1.bf16.msra.mxu0 %v457
        %475 = vmatprep.subr.bf16.mxu0 0
        %476 = vmatpush1.bf16.msra.mxu0 %v458
        %477 = vmatprep.subr.bf16.mxu0 0
        %478 = vmatpush1.bf16.msra.mxu0 %v459
        %479 = vmatprep.subr.bf16.mxu0 0
        %480 = vmatpush1.bf16.msra.mxu0 %v460
        %481 = vmatprep.subr.bf16.mxu0 0
        %482 = vmatpush1.bf16.msra.mxu0 %v461
        %483 = vmatprep.subr.bf16.mxu0 0
        %484 = vmatpush1.bf16.msra.mxu0 0
        %485 = vmatprep.subr.bf16.mxu0 0
        %486 = vmatpush1.bf16.msra.mxu0 0
        %487 = vmatprep.subr.bf16.mxu0 0
        %488 = vmatpush1.bf16.msra.mxu0 0
        %489 = vmatprep.subr.bf16.mxu0 0
        %490 = vmatpush1.bf16.msra.mxu0 0
        %491 = vmatprep.subr.bf16.mxu0 0
        %492 = vmatpush1.bf16.msra.mxu0 0
        %493 = vmatprep.subr.bf16.mxu0 0
        %494 = vmatpush1.bf16.msra.mxu0 0
        %495 = vmatprep.subr.bf16.mxu0 0
        %496 = vmatpush1.bf16.msra.mxu0 0
        %497 = vmatprep.subr.bf16.mxu0 0
        %498 = vmatpush1.bf16.msra.mxu0 0
        %499 = vmatprep.subr.bf16.mxu0 0
        %500 = vmatpush1.bf16.msra.mxu0 0
        %501 = vmatprep.subr.bf16.mxu0 0
        %502 = vmatpush1.bf16.msra.mxu0 0
        %503 = vmatprep.mubr.bf16.mxu0 0
        %504 = vmatmul.mubr.bf16.gmra.mrb[0].mxu0 %v469
        %v505 = vpop.f32.mrb[0].mxu0
        %v506 = vadd.f32 %v430, %v505
        %v507 = vpop.f32.mrb[0].mxu0
        %v508 = vpop.f32.mrb[0].mxu0
        %v509 = vadd.f32 %v430, %v508
        %v510 = vpop.f32.mrb[0].mxu0
        %511 = vdwg.mxu0
        %v512 = vmax.f32 %v506, 0.0
        %v513 = vmax.f32 %v509, 0.0
        %v514 = vadd.f32 %v512, %v224
        %v515 = vadd.f32 %v513, %v225
        %v516 = vmax.f32 %v514, 0.0
        %v517 = vmax.f32 %v515, 0.0
        %518 = vst.msk [vmem:[%s217] sm:$0xff] %vm271, %v516
        %519 = vst.msk [vmem:[%s217 + $0x8] sm:$0xff] %vm271, %v517
        %s520 = sand.u32 %s137, 1
        %s521 = scalar_lea.sflag [#allocation3], %s520
        %s522 = sand.u32 %s137, 1
        %s523 = smul.addr %s522, 16
        %s524 = scalar_lea.vmem [#allocation2], %s523
        // Predicated region
        $region41: #{tpu_custom_call.1} parent=39 // pred_check
          %p525 = pneg %p147
        $region42: #{tpu_custom_call.1} parent=39 // pred_check_branch
          %527 = sbr.rel (%p525) target = $region44
        $region43: #{tpu_custom_call.1} parent=39 // pred_region
          %s529 = ssub.s32 256, 256
          %530 = vsyncadd %s521, %s529
          %s531 = smul.addr %s19, 2
          %s532 = smul.addr %s531, 128
          %s533 = scalar_lea.hbm %s5, %s532
          %s534 = sshll.u32 %s524, 4
          %s535 = int_to_ptr.vmem [resolvable:$true] %s534
          %540 = dma.vmem_to_hbm [thread:$0]  %s535, 256, %s533, %s521, 128, 128, 8
        $region44: #{tpu_custom_call.1} parent=39 // pred_fallthru
          _
      $region40: #{tpu_custom_call.1} parent=5 // pred_fallthru
        _
      %p541 = scmp.le.s32.totalorder 2, %s14
      // Predicated region
      $region45: #{tpu_custom_call.1} parent=5 // pred_check
        %p542 = pneg %p541
      $region46: #{tpu_custom_call.1} parent=5 // pred_check_branch
        %544 = sbr.rel (%p542) target = $region48
      $region47: #{tpu_custom_call.1} parent=5 // pred_region
        %s545 = ssub.s32 %s14, 2
        // Predicated region
        $region49: #{tpu_custom_call.1} parent=47 // pred_check
          %p546 = pneg %p153
        $region50: #{tpu_custom_call.1} parent=47 // pred_check_branch
          %548 = sbr.rel (%p546) target = $region52
        $region51: #{tpu_custom_call.1} parent=47 // pred_region
          %s549 = sand.u32 %s138, 1
          %s550 = scalar_lea.sflag [#allocation3], %s549
          %s551 = sand.u32 %s138, 1
          %s552 = smul.addr %s551, 16
          %s553 = scalar_lea.vmem [#allocation2], %s552
          %554 = dma.done %s550, 256
        $region52: #{tpu_custom_call.1} parent=47 // pred_fallthru
          _
      $region48: #{tpu_custom_call.1} parent=5 // pred_fallthru
        _
    $region6: #{tpu_custom_call.1} parent=1 // loop_footer
      %s18 = sadd.s32 1, %s14
    $region7: #{tpu_custom_call.1} parent=1 // loop_footer_branch
      %13 = sbr.rel target = $region3
    $region8: #{tpu_custom_call.1} parent=1 // loop_exit
      _
    %555 = vsyncpa [#allocation3], 1
    %s556 = scalar_lea.sflag [#allocation3], 1
    %557 = vsyncpa %s556, 1

</llo_original>
